<compile_context>
chip_gen: v6e
topology: v6e:2x2x1
jax: 0.10.0
libtpu: 0.0.40
codegen_flags: <defaults>
</compile_context>

<pallas_src>
import functools
import numpy as np
import jax
import jax.numpy as jnp
from jax.experimental import pallas as pl
from jax.experimental.pallas import tpu as pltpu


_HARD_TN_CAP = 16384                  # sanity cap on the streamed tile width
_TARGET_STREAM_BYTES = 1 << 20        # ~1 MiB/step >> ~0.35us per-grid-step overhead


def _round_up(x, m):
    return (x + m - 1) // m * m


def _logit(p):
    """Threshold in dot space: sigmoid(dot) >= p  <=>  dot >= log(p/(1-p))."""
    p = float(p)
    if p <= 0.0:
        return float("-inf")
    if p >= 1.0:
        return float("inf")
    return float(np.log(p / (1.0 - p)))


@functools.lru_cache(maxsize=1)
def _vmem_config():
    """(vmem_limit_bytes, tile_budget_bytes) derived per TPU generation."""
    cap = None
    try:
        cap = getattr(pltpu.get_tpu_info(), "vmem_capacity_bytes", None)
    except Exception:
        cap = None
    if cap is not None and cap >= 96 * 1024 * 1024:
        # v5e / v6e: 128 MiB physical VMEM
        return 96 * 1024 * 1024, 48 * 1024 * 1024
    # v7x (64 MiB physical, 32 MiB scoped default) or unknown: stay conservative
    return 32 * 1024 * 1024, 14 * 1024 * 1024


def _choose_tile_and_pad(m, d, in_bytes, t_pad, budget_bytes):
    """Pick (TN, M_pad).

    TN is a multiple of 128 sized so per-step streamed bytes amortize the grid
    step overhead while the double-buffered pipeline (resident tokens + (D,TN)
    x tile + int8 (T_pad,TN) out tile) fits the VMEM budget.  M is padded only
    to a 128 multiple and TN is rebalanced to divide it (minimal zero padding).
    """
    m128 = _round_up(max(m, 1), 128)
    sub = max(1, 8 * (4 // max(in_bytes, 1)))          # sublane packing (f32:8, bf16:16)
    d_sub = _round_up(d, sub)                          # sublane-padded streamed-tile rows
    # resident tokens block, lane-padded to 128, conservatively double-buffered
    tok_bytes = 2 * _round_up(t_pad, sub) * _round_up(d, 128) * in_bytes
    avail = max(budget_bytes - tok_bytes, 0)
    # VMEM cost of 128 more output columns: x tile + int8 out tile, double-buffered
    per_128 = 128 * (2 * d_sub * in_bytes + 2 * _round_up(t_pad, 32))
    tn_budget = max(avail // per_128, 1) * 128
    tn_target = _round_up(max(1, -(-_TARGET_STREAM_BYTES // (d_sub * in_bytes))), 128)
    tn = max(128, min(tn_budget, tn_target, _HARD_TN_CAP))
    if m128 <= tn:
        return m128, m128                              # single grid step, no extra padding
    steps = -(-m128 // tn)
    tn = _round_up(-(-m128 // steps), 128)             # rebalance: at most ~128 padded cols
    return tn, steps * tn


# ----------------------------------------------------------------------------
# Pallas kernel: cross-adjacency mask, tiled over the flattened node slab.
# ----------------------------------------------------------------------------
def _cross_mask_kernel(cross_logit, tok_ref, xt_ref, out_ref):
    # tok_ref : (T_pad, D)  resident prompt tokens
    # xt_ref  : (D, TN)     lane-dense streamed tile of the transposed node slab
    # out_ref : (T_pad, TN) int8 mask tile
    #
    # Downstream only calls nonzero() on the adjacency, so we emit a mask of
    # (dot >= logit(prune)) instead of sigmoid values: no EUP exp, 4x smaller
    # HBM writeback / D2H than f32 similarities.
    dot = jnp.dot(tok_ref[...], xt_ref[...], preferred_element_type=jnp.float32)
    out_ref[...] = (dot >= cross_logit).astype(jnp.int8)


def _build_adjacency_fn(T, t_pad, d, m_pad, tn, cross_logit, inner_logit,
                        dtype, vmem_limit):
    kernel = functools.partial(_cross_mask_kernel, float(cross_logit))
    cross_call = pl.pallas_call(
        kernel,
        out_shape=jax.ShapeDtypeStruct((t_pad, m_pad), jnp.int8),
        grid=(m_pad // tn,),
        in_specs=[
            pl.BlockSpec((t_pad, d), lambda j: (0, 0)),   # tokens: resident
            pl.BlockSpec((d, tn), lambda j: (0, j)),      # transposed node slab: streamed
        ],
        out_specs=pl.BlockSpec((t_pad, tn), lambda j: (0, j)),  # lane-dense int8 tile
        compiler_params=pltpu.CompilerParams(
            # Inner adjacency is hoisted out, so every grid step writes a
            # distinct output tile -> "parallel" is safe and lets v7x split the
            # HBM-bound stream across both TensorCores (neutral on v5e/v6e).
            dimension_semantics=("parallel",),
            vmem_limit_bytes=vmem_limit),
    )

    inner_thr = float(inner_logit)

    def fn(tokens, x_slab_t):
        tok_c = tokens.astype(dtype)
        tok_pad = jnp.pad(tok_c, ((0, t_pad - T), (0, 0)))
        cross = cross_call(tok_pad, x_slab_t)
        # Tiny (T, T) inner prompt-graph adjacency: plain XLA (TxTxD matmul),
        # computed from the *unpadded* tokens.
        idot = jnp.dot(tok_c, tok_c.T, preferred_element_type=jnp.float32)
        inner = (idot >= inner_thr).astype(jnp.int8)
        return cross, inner

    return jax.jit(fn)


# ----------------------------------------------------------------------------
# HeavyPrompt module (parameters + forward glue)
# ----------------------------------------------------------------------------
def kaiming_uniform(key, shape, a=0.01):
    # torch.nn.init.kaiming_uniform_(mode='fan_in', nonlinearity='leaky_relu', a=0.01)
    fan_in = shape[1]
    gain = np.sqrt(2.0 / (1.0 + a * a))
    bound = gain * np.sqrt(3.0 / fan_in)
    return jax.random.uniform(key, shape, jnp.float32, -bound, bound)


class HeavyPrompt:
    def __init__(self, token_dim, token_num, cross_prune=0.1, inner_prune=0.01,
                 key=None, compute_dtype=jnp.bfloat16):
        # compute_dtype=bfloat16 (default) halves HBM/H2D traffic for the
        # mem-bound cross pass; dot products exactly at the prune threshold may
        # flip vs. an f32 reference -- pass compute_dtype=jnp.float32 for exact
        # reference semantics.  Output edge structure is otherwise identical.
        self.cross_prune = float(cross_prune)
        self.inner_prune = float(inner_prune)
        self.compute_dtype = jnp.dtype(compute_dtype)
        key = jax.random.PRNGKey(0) if key is None else key
        # group_num = 1 -> a single (token_num, token_dim) parameter.
        self.tokens = kaiming_uniform(key, (token_num, token_dim))
        self._fns = {}   # (T, t_pad, d, m_pad, tn, dtype) -> compiled callable

    def _get_fn(self, T, t_pad, d, m_pad, tn):
        vmem_limit, _ = _vmem_config()
        cache_key = (T, t_pad, d, m_pad, tn, self.compute_dtype.name)
        fn = self._fns.get(cache_key)
        if fn is None:
            fn = _build_adjacency_fn(T, t_pad, d, m_pad, tn,
                                     _logit(self.cross_prune),
                                     _logit(self.inner_prune),
                                     self.compute_dtype, vmem_limit)
            self._fns[cache_key] = fn
        return fn

    def _device_adjacency(self, x_np_list):
        """One fused device dispatch for the whole batch.

        Returns (cross_dev (t_pad, m_pad) int8, inner_dev (T, T) int8,
        offsets, m)."""
        T, D = self.tokens.shape
        t_pad = _round_up(T, 8)
        np_dtype = np.dtype(self.compute_dtype)
        sizes = [int(x.shape[0]) for x in x_np_list]
        offsets = np.concatenate([[0], np.cumsum(sizes)]).astype(np.int64)
        m = int(offsets[-1])
        _, budget = _vmem_config()
        tn, m_pad = _choose_tile_and_pad(m, D, np_dtype.itemsize, t_pad, budget)

        # Host-side TRANSPOSED (D, M_pad) slab in compute dtype: lane-dense
        # streamed tiles, single H2D upload, no device-side concat/transpose.
        slab = np.zeros((D, m_pad), dtype=np_dtype)
        col = 0
        for x in x_np_list:
            n = int(x.shape[0])
            slab[:, col:col + n] = np.asarray(x, dtype=np.float32).T.astype(np_dtype)
            col += n

        fn = self._get_fn(T, t_pad, D, m_pad, tn)
        cross_dev, inner_dev = fn(self.tokens, jnp.asarray(slab))
        return cross_dev, inner_dev, offsets, m

    def forward(self, graph_batch):
        """graph_batch: list of dicts {'x': (N_b, D) float array,
        'edge_index': (2, E_b) int64, 'y': int}.
        Returns a dict mimicking PyG Batch.from_data_list output."""
        T, D = self.tokens.shape
        x_np_list = [np.asarray(g['x'], dtype=np.float32) for g in graph_batch]
        cross_dev, inner_dev, offsets, m = self._device_adjacency(x_np_list)

        # Slice ON DEVICE before the D2H pull: only the (T, M) int8 mask crosses
        # PCIe.  Padded token rows / node columns have dot == 0 >= logit(prune)
        # (spurious nonzeros) and are stripped here, matching the reference.
        cross_mask = np.asarray(cross_dev[:T, :m])
        inner_mask = np.asarray(inner_dev)

        # inner_structure_update(): prompt sub-graph edge_index
        inner_edge_index = np.stack(np.nonzero(inner_mask), axis=0).astype(np.int64)

        tokens_np = np.asarray(self.tokens, dtype=np.float32)
        re_graph_list = []
        for b, g in enumerate(graph_batch):
            lo, hi = int(offsets[b]), int(offsets[b + 1])
            cross_adj = cross_mask[:, lo:hi]                       # (T, N_b)
            cross_edge_index = np.stack(np.nonzero(cross_adj), axis=0).astype(np.int64)
            cross_edge_index[1] = cross_edge_index[1] + T
            g_edge_index = np.asarray(g['edge_index'], dtype=np.int64) + T
            x = np.concatenate([tokens_np, x_np_list[b]], axis=0)
            edge_index = np.concatenate(
                [inner_edge_index, g_edge_index, cross_edge_index], axis=1)
            re_graph_list.append({'x': x, 'edge_index': edge_index, 'y': g['y']})

        # Batch.from_data_list: concat node features, offset edge indices,
        # build batch assignment vector.
        # TODO(synk): the PyG Batch object itself has no Pallas/JAX equivalent;
        # this dict mirrors its tensor contents.
        xs, eis, ys, batch_vec = [], [], [], []
        offset = 0
        for i, d_ in enumerate(re_graph_list):
            xs.append(d_['x'])
            eis.append(d_['edge_index'] + offset)
            ys.append(d_['y'])
            batch_vec.append(np.full((d_['x'].shape[0],), i, dtype=np.int64))
            offset += d_['x'].shape[0]
        return {
            'x': np.concatenate(xs, axis=0),
            'edge_index': np.concatenate(eis, axis=1),
            'y': np.asarray(ys, dtype=np.int64),
            'batch': np.concatenate(batch_vec, axis=0),
        }


# ----------------------------------------------------------------------------
# Example / smoke test
# ----------------------------------------------------------------------------
if __name__ == "__main__":
    key = jax.random.PRNGKey(0)
    k_tok, k_x, k_e = jax.random.split(key, 3)

    token_dim = 32     # D
    token_num = 8      # T
    batch = 2          # B graphs
    nodes = 16         # N nodes per graph
    edges = 24         # E edges per graph

    model = HeavyPrompt(token_dim, token_num, cross_prune=0.1,
                        inner_prune=0.01, key=k_tok)

    graph_batch = []
    xk = jax.random.split(k_x, batch)
    ek = jax.random.split(k_e, batch)
    for b in range(batch):
        x = np.asarray(jax.random.normal(xk[b], (nodes, token_dim), jnp.float32))
        edge_index = np.asarray(
            jax.random.randint(ek[b], (2, edges), 0, nodes), dtype=np.int64)
        graph_batch.append({'x': x, 'edge_index': edge_index, 'y': b % 2})

    # Run the fused device kernel once and block on it directly.
    cross_dev, inner_dev, offsets, m = model._device_adjacency(
        [g['x'] for g in graph_batch])
    jax.block_until_ready((cross_dev, inner_dev))

    # Tolerance-aware agreement check against a NumPy reference (entries may
    # only disagree if the f32 dot sits within bf16-rounding distance of the
    # prune threshold).
    tokens_np = np.asarray(model.tokens, dtype=np.float32)
    cross_logit = _logit(model.cross_prune)
    cross_mask = np.asarray(cross_dev[:token_num, :m])
    for b in range(batch):
        gx = np.asarray(graph_batch[b]['x'], dtype=np.float32)
        ref_dot = tokens_np @ gx.T
        ref_mask = ref_dot >= cross_logit
        got_mask = cross_mask[:, b * nodes:(b + 1) * nodes] != 0
        disagree = ref_mask != got_mask
        assert np.all(np.abs(ref_dot[disagree] - cross_logit) < 0.1), \
            "cross-adjacency mask mismatch beyond bf16 tolerance"

    # Full forward pass (host glue + kernel).
    out = model.forward(graph_batch)

    # Sanity checks on the batched result.
    total_nodes = batch * (token_num + nodes)
    assert out['x'].shape == (total_nodes, token_dim)
    assert out['batch'].shape == (total_nodes,)
    assert out['edge_index'].shape[0] == 2
    assert int(out['edge_index'].max()) < total_nodes

    print("KERNEL_OK")
</pallas_src>

<mosaic_0001>
module attributes {stable_mosaic.version = 11 : i64} {
  func.func @_cross_mask_kernel(%arg0: i32, %arg1: memref<8x32xbf16, #tpu.memory_space<vmem>>, %arg2: memref<32x128xbf16, #tpu.memory_space<vmem>>, %arg3: memref<8x128xi8, #tpu.memory_space<vmem>>) attributes {dimension_semantics = [#tpu.dimension_semantics<parallel>], iteration_bounds = array<i64: 1>, scalar_prefetch = 0 : i64, scratch_operands = 0 : i64, tpu.core_type = #tpu.core_type<tc>, window_params = [{pipeline_mode = #tpu.pipeline_mode<synchronous>, transform_indices = @transform_0, window_bounds = array<i64: 8, 32>}, {transform_indices = @transform_1, window_bounds = array<i64: 32, 128>}, {transform_indices = @transform_2, window_bounds = array<i64: 8, 128>}]} {
    %c0 = arith.constant 0 : index
    %c0_0 = arith.constant 0 : index
    %0 = vector.load %arg1[%c0, %c0_0] : memref<8x32xbf16, #tpu.memory_space<vmem>>, vector<8x32xbf16>
    %c0_1 = arith.constant 0 : index
    %c0_2 = arith.constant 0 : index
    %1 = vector.load %arg2[%c0_1, %c0_2] : memref<32x128xbf16, #tpu.memory_space<vmem>>, vector<32x128xbf16>
    %cst = arith.constant dense<0.000000e+00> : vector<8x128xf32>
    %2 = tpu.matmul %0, %1, %cst {dimension_numbers = #tpu.dot_dimension_numbers<[1], [0], [0], [1], [0, 0, 1, 1], [], []>} : vector<8x32xbf16>, vector<32x128xbf16>, vector<8x128xf32> -> vector<8x128xf32>
    %cst_3 = arith.constant -2.19722462 : f32
    %3 = vector.broadcast %cst_3 : f32 to vector<8x128xf32>
    %4 = arith.cmpf oge, %2, %3 : vector<8x128xf32>
    %5 = arith.extui %4 : vector<8x128xi1> to vector<8x128xi8>
    %c0_4 = arith.constant 0 : index
    %c0_5 = arith.constant 0 : index
    %6 = vector.load %arg3[%c0_4, %c0_5] : memref<8x128xi8, #tpu.memory_space<vmem>>, vector<8x128xi8>
    tpu.vector_store %arg3[%c0_4, %c0_5], %5 {strides = array<i32>} : memref<8x128xi8, #tpu.memory_space<vmem>>, vector<8x128xi8>,
    return
  }
  func.func @transform_0(%arg0: i32) -> (i32, i32) {
    %c0_i32 = arith.constant 0 : i32
    %c0_i32_0 = arith.constant 0 : i32
    %c0_i32_1 = arith.constant 0 : i32
    return %c0_i32, %c0_i32_0 : i32, i32
  }
  func.func @transform_1(%arg0: i32) -> (i32, i32) {
    %c0_i32 = arith.constant 0 : i32
    %c0_i32_0 = arith.constant 0 : i32
    return %c0_i32, %arg0 : i32, i32
  }
  func.func @transform_2(%arg0: i32) -> (i32, i32) {
    %c0_i32 = arith.constant 0 : i32
    %c0_i32_0 = arith.constant 0 : i32
    return %c0_i32, %arg0 : i32, i32
  }
}

</mosaic_0001>

<llo_original>
// kernel: fn.1
$region0: #{fn.1}
  #allocation0 [shape = 'u32[]', space=smem, size = 0x4, offset = 0x4, fixed_abs, tag = 'smem constant byte address 0x4 - core index']
  #allocation1 [shape = 'u32[144,128]{1,0:T(1,128)}', space=vmem, size = 0x12000, scoped, tag = 'internal scratch']
  %s0 = inlined_call_operand.vmem [shape: bf16[8,32], index: 0, kind: input, shape index: {}]
  %s1 = inlined_call_operand.vmem [shape: bf16[32,128], index: 1, kind: input, shape index: {}]
  %s2 = inlined_call_operand.hbm [shape: s8[8,128], index: 2, kind: output, shape index: {}]
  %s3 = sld [smem:[#allocation0]]
  $region18: #{fn.1} parent=0
    _
  %s5 = ssub.s32 1, %s3
  %s6 = scalar_select 0, %s5, %s3
  $region1: #{fn.1} parent=0
    #allocation2 [shape = 'u8[1024]{0}', space=vmem, size = 0x400, scoped, tag = 'output window, operand 0, single buffered']
    #allocation3 [shape = 's32[1]{0}', space=sflag, size = 0x4, scoped, tag = 'scoped memory for fn.1']
    %7 = vsyncpa [#allocation3], 0
    // Predicated region
    $region2: #{fn.1} parent=1 // pred_check
      _
    $region3: #{fn.1} parent=1 // pred_check_branch
      %9 = sbr.rel (0) target = $region5
    $region4: #{fn.1} parent=1 // pred_region
      _
    $region5: #{fn.1} parent=1 // pred_fallthru
      _
    // Predicated region
    $region6: #{fn.1} parent=1 // pred_check
      _
    $region7: #{fn.1} parent=1 // pred_check_branch
      %11 = sbr.rel (0) target = $region9
    $region8: #{fn.1} parent=1 // pred_region
      _
    $region9: #{fn.1} parent=1 // pred_fallthru
      _
    %v15 = vld [vmem:[%s0] sm:$0xf]
    %v16 = vld [vmem:[%s1] sm:$0xf]
    %v17 = vld [vmem:[%s1 + $0x4] sm:$0xf]
    %v18 = vld [vmem:[%s1 + $0x8] sm:$0xf]
    %v19 = vld [vmem:[%s1 + $0xc] sm:$0xf]
    %v24 = vunpack.c.l.b16 %v16
    %v25 = vunpack.c.l.b16 %v17
    %v26 = vunpack.c.l.b16 %v18
    %v27 = vunpack.c.l.b16 %v19
    %v28 = vpack.c.b16 %v25, %v24
    %v29 = vpack.c.b16 %v27, %v26
    %vm32 = vcmask 261120
    %v34 = vsel %vm32, %v15, 0
    %36 = vmatprep.subr.bf16.mxu0 0
    %37 = vmatpush1.bf16.msra.mxu0 0
    %38 = vmatprep.subr.bf16.mxu0 0
    %39 = vmatpush1.bf16.msra.mxu0 0
    %40 = vmatprep.subr.bf16.mxu0 0
    %41 = vmatpush1.bf16.msra.mxu0 0
    %42 = vmatprep.subr.bf16.mxu0 0
    %43 = vmatpush1.bf16.msra.mxu0 0
    %44 = vmatprep.subr.bf16.mxu0 0
    %45 = vmatpush1.bf16.msra.mxu0 0
    %46 = vmatprep.subr.bf16.mxu0 0
    %47 = vmatpush1.bf16.msra.mxu0 0
    %48 = vmatprep.subr.bf16.mxu0 0
    %49 = vmatpush1.bf16.msra.mxu0 %v29
    %50 = vmatprep.subr.bf16.mxu0 0
    %51 = vmatpush1.bf16.msra.mxu0 %v28
    %52 = vmatprep.subr.bf16.mxu0 0
    %53 = vmatpush2.bf16.msra.mxu0 0
    %54 = vmatprep.subr.bf16.mxu0 0
    %55 = vmatpush2.bf16.msra.mxu0 0
    %56 = vmatprep.subr.bf16.mxu0 0
    %57 = vmatpush2.bf16.msra.mxu0 0
    %58 = vmatprep.subr.bf16.mxu0 0
    %59 = vmatpush2.bf16.msra.mxu0 0
    %60 = vmatprep.subr.bf16.mxu0 0
    %61 = vmatpush2.bf16.msra.mxu0 0
    %62 = vmatprep.subr.bf16.mxu0 0
    %63 = vmatpush2.bf16.msra.mxu0 0
    %64 = vmatprep.subr.bf16.mxu0 0
    %65 = vmatpush2.bf16.msra.mxu0 0
    %66 = vmatprep.subr.bf16.mxu0 0
    %67 = vmatpush2.bf16.msra.mxu0 0
    %68 = vmatprep.mubr.bf16.mxu0 0
    %69 = vmatmul.mubr.bf16.gmra.mxu0 %v34
    %v70 = vpop.f32.mrf.mxu0
    %v71 = vadd.f32 0.0, %v70
    %v72 = vpop.f32.mrf.mxu0
    %v73 = vpop.f32.mrf.mxu0
    %v74 = vpop.f32.mrf.mxu0
    %75 = vdwg.mxu0
    %vm76 = vcmp.ge.f32.partialorder %v71, -2.1972246
    %vm77 = vmpackc.low %vm76, %vm76
    %vm78 = vmpackc.even %vm77, %vm77
    %v79 = vsel %vm78, 16843009, 0
    %80 = vst [vmem:[#allocation2] sm:$0x3] %v79
    // Predicated region
    $region10: #{fn.1} parent=1 // pred_check
      _
    $region11: #{fn.1} parent=1 // pred_check_branch
      %82 = sbr.rel (0) target = $region13
    $region12: #{fn.1} parent=1 // pred_region
      %s84 = ssub.s32 32, 32
      %85 = vsyncadd [#allocation3], %s84
      %s87 = sshll.u32 [#allocation2], 4
      %s88 = int_to_ptr.vmem [resolvable:$true] %s87
      %90 = dma.vmem_to_hbm [thread:$0]  %s88, 32, %s2, [#allocation3]
    $region13: #{fn.1} parent=1 // pred_fallthru
      _
    // Predicated region
    $region14: #{fn.1} parent=1 // pred_check
      _
    $region15: #{fn.1} parent=1 // pred_check_branch
      %92 = sbr.rel (0) target = $region17
    $region16: #{fn.1} parent=1 // pred_region
      %93 = dma.done [#allocation3], 32
    $region17: #{fn.1} parent=1 // pred_fallthru
      _
    %94 = vsyncpa [#allocation3], 1

</llo_original>
